<compile_context>
chip_gen: v6e
topology: v6e:2x2x1
jax: 0.10.0
libtpu: 0.0.40
codegen_flags: <defaults>
</compile_context>

<pallas_src>
import jax
import jax.numpy as jnp
from jax.experimental import pallas as pl
from jax.experimental.pallas import tpu as pltpu


# ----------------------------------------------------------------------------------------------
# helpers
# ----------------------------------------------------------------------------------------------
def _round_up(x: int, m: int) -> int:
    return (x + m - 1) // m * m


def _pick_tile(total_units: int, cap_units: int) -> int:
    """Largest divisor of total_units that is <= cap_units (used to pick the K tile)."""
    for d in range(min(cap_units, total_units), 0, -1):
        if total_units % d == 0:
            return d
    return 1


# ----------------------------------------------------------------------------------------------
# Steps 1 + 2: normalize_vision_inputs + RunningMeanAndVar (eval mode), fused elementwise kernel
# ----------------------------------------------------------------------------------------------
def prepare_norm_params(channel_num, running_mean, running_var, *, eps=1e-5, dtype=jnp.float32):
    """One-time prep: fold the /255 RGB scaling and (x - mean) * rsqrt(var + eps) into a single
    per-channel affine (scale, shift). running_mean/var are the module's stored statistics of
    the already /255-scaled observations (matching the PyTorch module's op order)."""
    c = channel_num
    rgb_scale = jnp.ones((c,), dtype)
    if c >= 3:
        rgb_scale = rgb_scale.at[:3].set(1.0 / 255.0)
    inv_std = jax.lax.rsqrt(running_var.astype(dtype) + eps)
    scale = (rgb_scale * inv_std).reshape(c, 1)
    shift = (-running_mean.astype(dtype) * inv_std).reshape(c, 1)
    return scale, shift


def _preprocess_kernel(x_ref, scale_ref, shift_ref, o_ref):
    # x_ref: (1, C, H*W); scale/shift: (C, 1) -> broadcast over the (lane-dense) spatial axis.
    o_ref[...] = x_ref[...] * scale_ref[...] + shift_ref[...]


def preprocess_observations(observations, scale, shift):
    """normalize_vision_inputs + RunningMeanAndVar(eval) as one Pallas elementwise kernel."""
    b, c, h, w = observations.shape
    x = observations.reshape(b, c, h * w)  # lane axis = flattened spatial (lane-dense)
    out = pl.pallas_call(
        _preprocess_kernel,
        out_shape=jax.ShapeDtypeStruct((b, c, h * w), observations.dtype),
        grid_spec=pltpu.PrefetchScalarGridSpec(
            num_scalar_prefetch=0,
            grid=(b,),
            in_specs=[
                pl.BlockSpec((1, c, h * w), lambda i: (i, 0, 0)),
                pl.BlockSpec((c, 1), lambda i: (0, 0)),
                pl.BlockSpec((c, 1), lambda i: (0, 0)),
            ],
            out_specs=pl.BlockSpec((1, c, h * w), lambda i: (i, 0, 0)),
        ),
        compiler_params=pltpu.CompilerParams(dimension_semantics=("parallel",)),
    )(x, scale, shift)
    return out.reshape(b, c, h, w)


# ----------------------------------------------------------------------------------------------
# Step 4: Flatten -> Linear -> ReLU head as a tiled MXU kernel with lane-dense output
# ----------------------------------------------------------------------------------------------
_TM_MAX = 256            # rows per M block
_TK_MAX = 2048           # reduction chunk (multiple of 128)
_MIN_PALLAS_ROWS = 256   # below this, a fused XLA dot beats the pallas_call launch overhead


def prepare_fc_params(weight, bias, dtype=jnp.float32):
    """One-time prep (outside the hot path): PyTorch (N, K) weight -> (K_pad, N_pad) with zero
    padding so the kernel output's last dim is a lane-dense multiple of 128."""
    n, k = weight.shape
    n_pad = _round_up(n, 128)
    k_pad = _round_up(k, 128)
    wt = jnp.zeros((k_pad, n_pad), dtype).at[:k, :n].set(weight.T.astype(dtype))
    b = jnp.zeros((1, n_pad), dtype).at[0, :n].set(bias.astype(dtype))
    return wt, b, n


def _fc_head_kernel(x_ref, wt_ref, b_ref, o_ref, acc_ref):
    kk = pl.program_id(1)

    @pl.when(kk == 0)
    def _():
        acc_ref[...] = jnp.zeros_like(acc_ref)

    acc_ref[...] += jnp.dot(x_ref[...], wt_ref[...], preferred_element_type=jnp.float32)

    @pl.when(kk == pl.num_programs(1) - 1)
    def _():
        # Fused bias + ReLU epilogue, unmasked stores (N_pad is a multiple of 128).
        o_ref[...] = jnp.maximum(acc_ref[...] + b_ref[...], 0.0).astype(o_ref.dtype)


def fc_head(features, wt_pad, b_pad, n_out, *, force_pallas=False):
    """Flatten -> Linear(prod(feature_shape), n_out) -> ReLU.

    features: (batch, *feature_shape), e.g. (B, 256, 7, 7)
    wt_pad:   (K_pad, N_pad) prepared weight, b_pad: (1, N_pad) prepared bias.
    """
    m = features.shape[0]
    x2d = features.reshape(m, -1)
    k = x2d.shape[1]
    k_pad, n_pad = wt_pad.shape

    if m < _MIN_PALLAS_ROWS and not force_pallas:
        # Tiny-M fast path: let XLA fuse the dot; the Pallas launch overhead dominates here.
        y = jnp.maximum(x2d @ wt_pad[:k, :n_out] + b_pad[0, :n_out], 0.0)
        return y.astype(features.dtype)

    # Pad rows to the M tile (>= sublane 8) and K up to the prepped K_pad.
    tm = min(_TM_MAX, _round_up(m, 8))
    m_pad = _round_up(m, tm)
    if (m_pad, k_pad) != x2d.shape:
        x2d = jnp.pad(x2d, ((0, m_pad - m), (0, k_pad - k)))

    tk = 128 * _pick_tile(k_pad // 128, _TK_MAX // 128)
    grid = (m_pad // tm, k_pad // tk)

    cost = pl.CostEstimate(
        flops=2 * m_pad * k_pad * n_pad,
        transcendentals=0,
        bytes_accessed=4 * (m_pad * k_pad + k_pad * n_pad + m_pad * n_pad + n_pad),
    )

    out = pl.pallas_call(
        _fc_head_kernel,
        out_shape=jax.ShapeDtypeStruct((m_pad, n_pad), features.dtype),
        grid_spec=pltpu.PrefetchScalarGridSpec(
            num_scalar_prefetch=0,
            grid=grid,
            in_specs=[
                pl.BlockSpec((tm, tk), lambda i, j: (i, j)),       # x tile
                pl.BlockSpec((tk, n_pad), lambda i, j: (j, 0)),    # prepped weight tile
                pl.BlockSpec((1, n_pad), lambda i, j: (0, 0)),     # bias (resident)
            ],
            out_specs=pl.BlockSpec((tm, n_pad), lambda i, j: (i, 0)),
            scratch_shapes=[pltpu.VMEM((tm, n_pad), jnp.float32)],
        ),
        compiler_params=pltpu.CompilerParams(
            dimension_semantics=("parallel", "arbitrary"),
        ),
        cost_estimate=cost,
    )(x2d, wt_pad, b_pad)

    return out[:m, :n_out]


# ----------------------------------------------------------------------------------------------
# demo / correctness check
# ----------------------------------------------------------------------------------------------
if __name__ == "__main__":
    batch, channels, spatial, output_size = 2, 4, 16, 32
    key = jax.random.PRNGKey(0)
    k_obs, k_feat, k_w, k_b, k_mean, k_var = jax.random.split(key, 6)

    # ---- steps 1 + 2: observation preprocessing ------------------------------------------
    observations = jax.random.uniform(
        k_obs, (batch, channels, spatial, spatial), dtype=jnp.float32, minval=0.0, maxval=255.0)
    running_mean = jax.random.normal(k_mean, (channels,), jnp.float32) * 0.1
    running_var = jax.random.uniform(k_var, (channels,), jnp.float32, minval=0.5, maxval=1.5)
    eps = 1e-5

    scale, shift = prepare_norm_params(channels, running_mean, running_var, eps=eps)
    pre = jax.block_until_ready(preprocess_observations(observations, scale, shift))

    obs_ref = observations
    if channels >= 3:
        obs_ref = obs_ref.at[:, 0:3, :, :].set(obs_ref[:, 0:3, :, :] / 255.0)
    pre_ref = (obs_ref - running_mean[None, :, None, None]) * jax.lax.rsqrt(
        running_var[None, :, None, None] + eps)
    assert pre.shape == observations.shape
    assert jnp.allclose(pre, pre_ref, atol=1e-3, rtol=1e-5)

    # ---- step 3: backbone -----------------------------------------------------------------
    # TODO(synk): resnet18 GroupNorm conv backbone is not translated to Pallas; the FC head is
    # exercised on a stand-in (256, 7, 7) feature map matching the module's documented shape.
    feat_c, feat_h, feat_w = 256, 7, 7
    features = jax.random.normal(k_feat, (batch, feat_c, feat_h, feat_w), jnp.float32)

    # ---- step 4: Flatten -> Linear -> ReLU head (Pallas matmul) ----------------------------
    in_features = feat_c * feat_h * feat_w  # 12544
    fc_weight = jax.random.normal(k_w, (output_size, in_features), jnp.float32) * 0.02
    fc_bias = jax.random.normal(k_b, (output_size,), jnp.float32) * 0.02

    wt_pad, b_pad, n_out = prepare_fc_params(fc_weight, fc_bias)   # one-time prep
    out = jax.block_until_ready(fc_head(features, wt_pad, b_pad, n_out, force_pallas=True))

    ref = jnp.maximum(features.reshape(batch, -1) @ fc_weight.T + fc_bias, 0.0)
    assert out.shape == (batch, output_size)
    assert jnp.allclose(out, ref, atol=2e-3, rtol=2e-3)

    print("KERNEL_OK")
</pallas_src>

<mosaic_0001>
module attributes {stable_mosaic.version = 11 : i64} {
  func.func @_preprocess_kernel(%arg0: i32, %arg1: memref<1x4x256xf32, #tpu.memory_space<vmem>>, %arg2: memref<4x1xf32, #tpu.memory_space<vmem>>, %arg3: memref<4x1xf32, #tpu.memory_space<vmem>>, %arg4: memref<1x4x256xf32, #tpu.memory_space<vmem>>) attributes {dimension_semantics = [#tpu.dimension_semantics<parallel>], iteration_bounds = array<i64: 2>, scalar_prefetch = 0 : i64, scratch_operands = 0 : i64, tpu.core_type = #tpu.core_type<tc>, window_params = [{transform_indices = @transform_0, window_bounds = array<i64: 1, 4, 256>}, {pipeline_mode = #tpu.pipeline_mode<synchronous>, transform_indices = @transform_1, window_bounds = array<i64: 4, 1>}, {pipeline_mode = #tpu.pipeline_mode<synchronous>, transform_indices = @transform_2, window_bounds = array<i64: 4, 1>}, {transform_indices = @transform_3, window_bounds = array<i64: 1, 4, 256>}]} {
    %c0 = arith.constant 0 : index
    %c0_0 = arith.constant 0 : index
    %c0_1 = arith.constant 0 : index
    %0 = vector.load %arg1[%c0, %c0_0, %c0_1] : memref<1x4x256xf32, #tpu.memory_space<vmem>>, vector<1x4x256xf32>
    %c0_2 = arith.constant 0 : index
    %c0_3 = arith.constant 0 : index
    %1 = vector.load %arg2[%c0_2, %c0_3] : memref<4x1xf32, #tpu.memory_space<vmem>>, vector<4x1xf32>
    %2 = vector.shape_cast %1 : vector<4x1xf32> to vector<1x4x1xf32>
    %3 = vector.broadcast %2 : vector<1x4x1xf32> to vector<1x4x256xf32>
    %4 = arith.mulf %0, %3 : vector<1x4x256xf32>
    %c0_4 = arith.constant 0 : index
    %c0_5 = arith.constant 0 : index
    %5 = vector.load %arg3[%c0_4, %c0_5] : memref<4x1xf32, #tpu.memory_space<vmem>>, vector<4x1xf32>
    %6 = vector.shape_cast %5 : vector<4x1xf32> to vector<1x4x1xf32>
    %7 = vector.broadcast %6 : vector<1x4x1xf32> to vector<1x4x256xf32>
    %8 = arith.addf %4, %7 : vector<1x4x256xf32>
    %c0_6 = arith.constant 0 : index
    %c0_7 = arith.constant 0 : index
    %c0_8 = arith.constant 0 : index
    %9 = vector.load %arg4[%c0_6, %c0_7, %c0_8] : memref<1x4x256xf32, #tpu.memory_space<vmem>>, vector<1x4x256xf32>
    tpu.vector_store %arg4[%c0_6, %c0_7, %c0_8], %8 {strides = array<i32>} : memref<1x4x256xf32, #tpu.memory_space<vmem>>, vector<1x4x256xf32>,
    return
  }
  func.func @transform_0(%arg0: i32) -> (i32, i32, i32) {
    %c0_i32 = arith.constant 0 : i32
    %c0_i32_0 = arith.constant 0 : i32
    %c0_i32_1 = arith.constant 0 : i32
    return %arg0, %c0_i32, %c0_i32_0 : i32, i32, i32
  }
  func.func @transform_1(%arg0: i32) -> (i32, i32) {
    %c0_i32 = arith.constant 0 : i32
    %c0_i32_0 = arith.constant 0 : i32
    %c0_i32_1 = arith.constant 0 : i32
    return %c0_i32, %c0_i32_0 : i32, i32
  }
  func.func @transform_2(%arg0: i32) -> (i32, i32) {
    %c0_i32 = arith.constant 0 : i32
    %c0_i32_0 = arith.constant 0 : i32
    %c0_i32_1 = arith.constant 0 : i32
    return %c0_i32, %c0_i32_0 : i32, i32
  }
  func.func @transform_3(%arg0: i32) -> (i32, i32, i32) {
    %c0_i32 = arith.constant 0 : i32
    %c0_i32_0 = arith.constant 0 : i32
    %c0_i32_1 = arith.constant 0 : i32
    return %arg0, %c0_i32, %c0_i32_0 : i32, i32, i32
  }
}

</mosaic_0001>

<llo_original>
// kernel: tpu_custom_call.1
$region0: #{tpu_custom_call.1}
  #allocation0 [shape = 'u32[]', space=smem, size = 0x4, offset = 0x4, fixed_abs, tag = 'smem constant byte address 0x4 - core index']
  #allocation1 [shape = 'u32[144,128]{1,0:T(1,128)}', space=vmem, size = 0x12000, scoped, tag = 'internal scratch']
  %s0 = inlined_call_operand.hbm [shape: f32[2,4,256], index: 0, kind: input, shape index: {}]
  %s1 = inlined_call_operand.vmem [shape: f32[4,1], index: 1, kind: input, shape index: {}]
  %s2 = inlined_call_operand.vmem [shape: f32[4,1], index: 2, kind: input, shape index: {}]
  %s3 = inlined_call_operand.hbm [shape: f32[2,4,256], index: 3, kind: output, shape index: {}]
  %s4 = sld [smem:[#allocation0]]
  $region49: #{tpu_custom_call.1} parent=0
    _
  %s6 = ssub.s32 1, %s4
  %s7 = scalar_select 0, %s6, %s4
  $region1: #{tpu_custom_call.1} parent=0
    #allocation2 [shape = 'u8[8192]{0}', space=vmem, size = 0x2000, scoped, tag = 'input window, operand 0']
    #allocation3 [shape = 's32[2]{0}', space=sflag, size = 0x8, scoped, tag = 'scoped memory for tpu_custom_call.1']
    #allocation4 [shape = 's32[2]{0}', space=sflag, size = 0x8, scoped, tag = 'scoped memory for tpu_custom_call.1']
    #allocation5 [shape = 'u8[8192]{0}', space=vmem, size = 0x2000, scoped, tag = 'output window, operand 0']
    %8 = vsyncpa [#allocation3], 0
    %s9 = scalar_lea.sflag [#allocation3], 1
    %10 = vsyncpa %s9, 0
    %11 = vsyncpa [#allocation4], 0
    %s12 = scalar_lea.sflag [#allocation4], 1
    %13 = vsyncpa %s12, 0
    loop: start=0, step=1, limit=4
    $region2: #{tpu_custom_call.1} parent=1 // loop_pre_header
      _
    $region3: #{tpu_custom_call.1} parent=1 // loop_header
      %s15 = sphi 0, %s19
      %p16 = scmp.ge.s32.totalorder %s15, 4
      %s25 = sphi 0, %s27
      %s28 = sphi 0, %s25
      %s29 = sphi 0, %s28
      %s45 = sphi 0, %s29
      %s49 = sphi 0, %s49
      %s51 = sphi 0, %s49
      %s52 = sphi 0, %s51
      %s66 = sphi 0, %s52
      %s70 = sphi 0, %s70
      %s72 = sphi 0, %s70
      %s73 = sphi 0, %s72
      %s87 = sphi 0, %s73
      %s93 = sphi 0, %s95
      %s96 = sphi 0, %s93
      %s97 = sphi 0, %s96
      %s113 = sphi 0, %s97
    $region4: #{tpu_custom_call.1} parent=1 // loop_header_branch
      %18 = sbr.rel (%p16) target = $region8
    $region5: #{tpu_custom_call.1} parent=1 // loop_body
      %s20 = ssub.s32 %s15, 1
      %s21 = ssub.s32 %s15, 2
      %s22 = sadd.s32 %s15, 1
      %s23 = ssub.s32 %s15, %s22
      %p24 = scmp.eq.s32.totalorder %s23, 0
      %s26 = sadd.s32 %s25, 1
      %s27 = scalar_select %p24, %s25, %s26
      %p30 = pneg %p24
      %p31 = scmp.eq.s32.totalorder %s15, 1
      %p32 = por %p30, %p31
      %p33 = scmp.ne.s32.totalorder %s25, %s28
      %p34 = scmp.eq.s32.totalorder %s15, 0
      %p35 = por %p33, %p34
      %p36 = scmp.ne.s32.totalorder %s25, %s28
      %p37 = scmp.eq.s32.totalorder %s20, 1
      %p38 = por %p36, %p37
      %p39 = scmp.ne.s32.totalorder %s28, %s29
      %p40 = scmp.eq.s32.totalorder %s20, 0
      %p41 = por %p39, %p40
      %p42 = scmp.ne.s32.totalorder %s28, %s29
      %p43 = scmp.eq.s32.totalorder %s21, 1
      %p44 = por %p42, %p43
      %p46 = scmp.ne.s32.totalorder %s29, %s45
      %p47 = scmp.eq.s32.totalorder %s21, 0
      %p48 = por %p46, %p47
      %s50 = sadd.s32 %s49, 1
      %p53 = scmp.eq.s32.totalorder %s15, 1
      %p54 = scmp.ne.s32.totalorder %s49, %s51
      %p55 = scmp.eq.s32.totalorder %s15, 0
      %p56 = por %p54, %p55
      %p57 = scmp.ne.s32.totalorder %s49, %s51
      %p58 = scmp.eq.s32.totalorder %s20, 1
      %p59 = por %p57, %p58
      %p60 = scmp.ne.s32.totalorder %s51, %s52
      %p61 = scmp.eq.s32.totalorder %s20, 0
      %p62 = por %p60, %p61
      %p63 = scmp.ne.s32.totalorder %s51, %s52
      %p64 = scmp.eq.s32.totalorder %s21, 1
      %p65 = por %p63, %p64
      %p67 = scmp.ne.s32.totalorder %s52, %s66
      %p68 = scmp.eq.s32.totalorder %s21, 0
      %p69 = por %p67, %p68
      %s71 = sadd.s32 %s70, 1
      %p74 = scmp.eq.s32.totalorder %s15, 1
      %p75 = scmp.ne.s32.totalorder %s70, %s72
      %p76 = scmp.eq.s32.totalorder %s15, 0
      %p77 = por %p75, %p76
      %p78 = scmp.ne.s32.totalorder %s70, %s72
      %p79 = scmp.eq.s32.totalorder %s20, 1
      %p80 = por %p78, %p79
      %p81 = scmp.ne.s32.totalorder %s72, %s73
      %p82 = scmp.eq.s32.totalorder %s20, 0
      %p83 = por %p81, %p82
      %p84 = scmp.ne.s32.totalorder %s72, %s73
      %p85 = scmp.eq.s32.totalorder %s21, 1
      %p86 = por %p84, %p85
      %p88 = scmp.ne.s32.totalorder %s73, %s87
      %p89 = scmp.eq.s32.totalorder %s21, 0
      %p90 = por %p88, %p89
      %s91 = ssub.s32 %s15, %s22
      %p92 = scmp.eq.s32.totalorder %s91, 0
      %s94 = sadd.s32 %s93, 1
      %s95 = scalar_select %p92, %s93, %s94
      %p98 = pneg %p92
      %p99 = scmp.eq.s32.totalorder %s15, 1
      %p100 = por %p98, %p99
      %p101 = scmp.ne.s32.totalorder %s93, %s96
      %p102 = scmp.eq.s32.totalorder %s15, 0
      %p103 = por %p101, %p102
      %p104 = scmp.ne.s32.totalorder %s93, %s96
      %p105 = scmp.eq.s32.totalorder %s20, 1
      %p106 = por %p104, %p105
      %p107 = scmp.ne.s32.totalorder %s96, %s97
      %p108 = scmp.eq.s32.totalorder %s20, 0
      %p109 = por %p107, %p108
      %p110 = scmp.ne.s32.totalorder %s96, %s97
      %p111 = scmp.eq.s32.totalorder %s21, 1
      %p112 = por %p110, %p111
      %p114 = scmp.ne.s32.totalorder %s97, %s113
      %p115 = scmp.eq.s32.totalorder %s21, 0
      %p116 = por %p114, %p115
      %p117 = scmp.le.s32.totalorder 1, %s15
      %p118 = scmp.lt.s32.totalorder %s15, 3
      %p119 = pnand %p117, %p118
      %p120 = pneg %p119
      // Predicated region
      $region9: #{tpu_custom_call.1} parent=5 // pred_check
        _
      $region10: #{tpu_custom_call.1} parent=5 // pred_check_branch
        %122 = sbr.rel (%p119) target = $region12
      $region11: #{tpu_custom_call.1} parent=5 // pred_region
        %s123 = ssub.s32 %s15, 1
        // Predicated region
        $region13: #{tpu_custom_call.1} parent=11 // pred_check
          %p124 = pneg %p62
        $region14: #{tpu_custom_call.1} parent=11 // pred_check_branch
          %126 = sbr.rel (%p124) target = $region16
        $region15: #{tpu_custom_call.1} parent=11 // pred_region
          _
        $region16: #{tpu_custom_call.1} parent=11 // pred_fallthru
          _
        // Predicated region
        $region17: #{tpu_custom_call.1} parent=11 // pred_check
          %p127 = pneg %p83
        $region18: #{tpu_custom_call.1} parent=11 // pred_check_branch
          %129 = sbr.rel (%p127) target = $region20
        $region19: #{tpu_custom_call.1} parent=11 // pred_region
          _
        $region20: #{tpu_custom_call.1} parent=11 // pred_fallthru
          _
      $region12: #{tpu_custom_call.1} parent=5 // pred_fallthru
        _
      %p130 = scmp.lt.s32.totalorder %s15, 2
      // Predicated region
      $region21: #{tpu_custom_call.1} parent=5 // pred_check
        %p131 = pneg %p130
      $region22: #{tpu_custom_call.1} parent=5 // pred_check_branch
        %133 = sbr.rel (%p131) target = $region24
      $region23: #{tpu_custom_call.1} parent=5 // pred_region
        // Predicated region
        $region25: #{tpu_custom_call.1} parent=23 // pred_check
          %p134 = pneg %p35
        $region26: #{tpu_custom_call.1} parent=23 // pred_check_branch
          %136 = sbr.rel (%p134) target = $region28
        $region27: #{tpu_custom_call.1} parent=23 // pred_region
          %s137 = sand.u32 %s25, 1
          %s138 = scalar_lea.sflag [#allocation3], %s137
          %s139 = sand.u32 %s25, 1
          %s140 = smul.addr %s139, 8
          %s141 = scalar_lea.vmem [#allocation2], %s140
          %s143 = ssub.s32 128, 128
          %144 = vsyncadd %s138, %s143
          %s145 = smul.addr %s15, 2
          %s146 = smul.addr %s145, 64
          %s147 = scalar_lea.hbm %s0, %s146
          %s149 = sshll.u32 %s141, 4
          %s150 = int_to_ptr.vmem [resolvable:$true] %s149
          %152 = dma.hbm_to_vmem [thread:$0]  %s147, 128, %s150, %s138
        $region28: #{tpu_custom_call.1} parent=23 // pred_fallthru
          _
      $region24: #{tpu_custom_call.1} parent=5 // pred_fallthru
        _
      %p153 = scmp.le.s32.totalorder 1, %s15
      %p154 = scmp.lt.s32.totalorder %s15, 3
      %p155 = pnand %p153, %p154
      %p156 = pneg %p155
      // Predicated region
      $region29: #{tpu_custom_call.1} parent=5 // pred_check
        _
      $region30: #{tpu_custom_call.1} parent=5 // pred_check_branch
        %158 = sbr.rel (%p155) target = $region32
      $region31: #{tpu_custom_call.1} parent=5 // pred_region
        %s159 = ssub.s32 %s15, 1
        %s160 = sand.u32 %s28, 1
        %s161 = scalar_lea.sflag [#allocation3], %s160
        %s162 = sand.u32 %s28, 1
        %s163 = smul.addr %s162, 8
        %s164 = scalar_lea.vmem [#allocation2], %s163
        // Predicated region
        $region33: #{tpu_custom_call.1} parent=31 // pred_check
          %p165 = pneg %p41
        $region34: #{tpu_custom_call.1} parent=31 // pred_check_branch
          %167 = sbr.rel (%p165) target = $region36
        $region35: #{tpu_custom_call.1} parent=31 // pred_region
          %168 = dma.done %s161, 128
        $region36: #{tpu_custom_call.1} parent=31 // pred_fallthru
          _
        %s169 = sand.u32 %s28, 1
        %s170 = scalar_lea.sflag [#allocation3], %s169
        %s171 = sand.u32 %s28, 1
        %s172 = smul.addr %s171, 8
        %s173 = scalar_lea.vmem [#allocation2], %s172
        %p174 = pneg %p41
        %p175 = pneg %p38
        %p176 = pneg %p62
        %p177 = pneg %p59
        %p178 = pneg %p83
        %p179 = pneg %p80
        %p180 = pneg %p109
        %p181 = pneg %p106
        %s182 = sand.u32 %s96, 1
        %s183 = scalar_lea.sflag [#allocation4], %s182
        %s184 = sand.u32 %s96, 1
        %s185 = smul.addr %s184, 8
        %s186 = scalar_lea.vmem [#allocation5], %s185
        %v187 = vld [vmem:[%s164] sm:$0xff]
        %v188 = vld [vmem:[%s1] sm:$0xf]
        %190 = vset.pattern.permute.xlu0 0
        %191 = vperm.xlu0 %190, %v188
        %v192 = vpop.permute.xlu0 %191
        %v194 = vunpack.c.l.s4 839922192
        %v195 = vunpack.c.0.s8 %v194
        %v196 = vlaneseq
        %v197 = vshrl.u32 %v196, 7
        %v198 = vsub.s32 %v195, %v197
        %v199 = vrot.slane %v192, %v198
        %v201 = vmul.f32 %v187, %v199
        %v202 = vld [vmem:[%s2] sm:$0xf]
        %204 = vset.pattern.permute.xlu0 0
        %205 = vperm.xlu0 %204, %v202
        %v206 = vpop.permute.xlu0 %205
        %v208 = vunpack.c.l.s4 839922192
        %v209 = vunpack.c.0.s8 %v208
        %v210 = vlaneseq
        %v211 = vshrl.u32 %v210, 7
        %v212 = vsub.s32 %v209, %v211
        %v213 = vrot.slane %v206, %v212
        %v215 = vadd.f32 %v201, %v213
        %216 = vst [vmem:[%s186] sm:$0xff] %v215
        %s217 = sand.u32 %s96, 1
        %s218 = scalar_lea.sflag [#allocation4], %s217
        %s219 = sand.u32 %s96, 1
        %s220 = smul.addr %s219, 8
        %s221 = scalar_lea.vmem [#allocation5], %s220
        // Predicated region
        $region37: #{tpu_custom_call.1} parent=31 // pred_check
          %p222 = pneg %p106
        $region38: #{tpu_custom_call.1} parent=31 // pred_check_branch
          %224 = sbr.rel (%p222) target = $region40
        $region39: #{tpu_custom_call.1} parent=31 // pred_region
          %s226 = ssub.s32 128, 128
          %227 = vsyncadd %s218, %s226
          %s228 = smul.addr %s20, 2
          %s229 = smul.addr %s228, 64
          %s230 = scalar_lea.hbm %s3, %s229
          %s232 = sshll.u32 %s221, 4
          %s233 = int_to_ptr.vmem [resolvable:$true] %s232
          %235 = dma.vmem_to_hbm [thread:$0]  %s233, 128, %s230, %s218
        $region40: #{tpu_custom_call.1} parent=31 // pred_fallthru
          _
      $region32: #{tpu_custom_call.1} parent=5 // pred_fallthru
        _
      %p236 = scmp.le.s32.totalorder 2, %s15
      // Predicated region
      $region41: #{tpu_custom_call.1} parent=5 // pred_check
        %p237 = pneg %p236
      $region42: #{tpu_custom_call.1} parent=5 // pred_check_branch
        %239 = sbr.rel (%p237) target = $region44
      $region43: #{tpu_custom_call.1} parent=5 // pred_region
        %s240 = ssub.s32 %s15, 2
        // Predicated region
        $region45: #{tpu_custom_call.1} parent=43 // pred_check
          %p241 = pneg %p112
        $region46: #{tpu_custom_call.1} parent=43 // pred_check_branch
          %243 = sbr.rel (%p241) target = $region48
        $region47: #{tpu_custom_call.1} parent=43 // pred_region
          %s244 = sand.u32 %s97, 1
          %s245 = scalar_lea.sflag [#allocation4], %s244
          %s246 = sand.u32 %s97, 1
          %s247 = smul.addr %s246, 8
          %s248 = scalar_lea.vmem [#allocation5], %s247
          %249 = dma.done %s245, 128
        $region48: #{tpu_custom_call.1} parent=43 // pred_fallthru
          _
      $region44: #{tpu_custom_call.1} parent=5 // pred_fallthru
        _
    $region6: #{tpu_custom_call.1} parent=1 // loop_footer
      %s19 = sadd.s32 1, %s15
    $region7: #{tpu_custom_call.1} parent=1 // loop_footer_branch
      %14 = sbr.rel target = $region3
    $region8: #{tpu_custom_call.1} parent=1 // loop_exit
      _
    %250 = vsyncpa [#allocation3], 1
    %s251 = scalar_lea.sflag [#allocation3], 1
    %252 = vsyncpa %s251, 1
    %253 = vsyncpa [#allocation4], 1
    %s254 = scalar_lea.sflag [#allocation4], 1
    %255 = vsyncpa %s254, 1

</llo_original>
